<compile_context>
chip_gen: v7x
topology: tpu7x:2x2x1
jax: 0.10.0
libtpu: 0.0.40
codegen_flags: <defaults>
</compile_context>

<pallas_src>
import functools
from dataclasses import dataclass

import jax
import jax.numpy as jnp
from jax.experimental import pallas as pl
from jax.experimental.pallas import tpu as pltpu

LANE = 128
NEG_FILL = -1e30  # off-block fill for the block-diagonal layer-1 bias (killed by ReLU)


def _align(x, m):
    return -(-x // m) * m


@dataclass(frozen=True)
class MultiLogCfg:
    N: int; S: int; V: int; E: int; H: int; P: int; AH: int
    V_PAD: int
    # bf16 `wts` slab row offsets (all 16-aligned for bf16 sublane packing)
    EMB_R: int; W1_R: int; W2_R: int; ENCW_R: int; DECW_R: int; WROWS: int
    # f32 `pack` slab row offsets (8-aligned)
    B1_R: int; B2_R: int; ENCB_R: int; DECB_R: int; MB_R: int; MW_R: int; PROWS: int
    OUT_ROWS: int


def make_cfg(*, num_nodes, seq, vocab, emb_dim, hidden, prob_list, ae_hidden):
    N, S, V, E, H, P, AH = num_nodes, seq, vocab, emb_dim, hidden, prob_list, ae_hidden
    assert P == LANE, "kernel assumes prob_list_size == 128 (module default)"
    assert max(E, H, AH) <= LANE and N * H <= LANE and N + 1 <= 8

    v_pad = _align(V, 16)
    emb_r = 0
    w1_r = _align(emb_r + v_pad, 16)
    w2_r = _align(w1_r + E, 16)
    encw_r = _align(w2_r + N * H, 16)
    decw_r = _align(encw_r + P, 16)
    wrows = _align(decw_r + AH, 16)

    b1_r = 0
    b2_r = _align(b1_r + N, 8)
    encb_r = _align(b2_r + N, 8)
    decb_r = _align(encb_r + 1, 8)
    mb_r = _align(decb_r + 1, 8)
    mw_r = _align(mb_r + 1, 8)
    prows = _align(mw_r + 2 * N, 8)

    out_rows = _align(N + 1, 8)
    return MultiLogCfg(N, S, V, E, H, P, AH, v_pad,
                       emb_r, w1_r, w2_r, encw_r, decw_r, wrows,
                       b1_r, b2_r, encb_r, decb_r, mb_r, mw_r, prows, out_rows)


# ----------------------------- Pallas kernel ---------------------------------
def multilog_kernel(ids_ref, wts_ref, pack_ref, out_ref, *, cfg):
    N, S = cfg.N, cfg.S
    E, H, P, AH, VP = cfg.E, cfg.H, cfg.P, cfg.AH, cfg.V_PAD

    b = pl.program_id(0)
    base = b * (N * S)

    # ---- fused embedding lookup + mean pool as ONE one-hot MXU matmul --------------
    # counts[n, v] = (1/S) * #{ s : ids[b, n, s] == v } ;  pooled = counts @ emb_table
    iota_v = jax.lax.broadcasted_iota(jnp.int32, (1, VP), 1)
    inv_s = jnp.float32(1.0 / S)
    rows = []
    for n in range(N):                      # N, S tiny & static -> unrolled VPU compares
        acc = jnp.zeros((1, VP), jnp.float32)
        for s in range(S):
            acc = acc + (iota_v == ids_ref[base + n * S + s]).astype(jnp.float32)
        rows.append(acc * inv_s)
    counts = jnp.concatenate(rows, axis=0)                               # [N, VP] f32
    emb = wts_ref[cfg.EMB_R:cfg.EMB_R + VP, 0:E]                         # [VP, E] bf16
    pooled = jnp.dot(counts.astype(jnp.bfloat16), emb,
                     preferred_element_type=jnp.float32)                 # [N, E]  f32

    # ---- Stage 1: per-node standalone estimators (no diagonal extraction) ----------
    # w1 node-concatenated along lanes; b1 packed block-diagonally with -1e30 fill so the
    # ReLU zeroes off-diagonal blocks; w2 row-stacked per node so the second dot yields [N,P].
    w1_cat = wts_ref[cfg.W1_R:cfg.W1_R + E, 0:N * H]                     # [E, N*H]  bf16
    w2_stk = wts_ref[cfg.W2_R:cfg.W2_R + N * H, 0:P]                     # [N*H, P]  bf16
    b1_bd = pack_ref[cfg.B1_R:cfg.B1_R + N, 0:N * H]                     # [N, N*H]  f32
    b2 = pack_ref[cfg.B2_R:cfg.B2_R + N, 0:P]                            # [N, P]    f32

    h_full = jnp.dot(pooled.astype(jnp.bfloat16), w1_cat,
                     preferred_element_type=jnp.float32)                 # [N, N*H]
    h_bd = jnp.maximum(h_full + b1_bd, 0.0)                              # block-diagonal [N, N*H]
    logits = jnp.dot(h_bd.astype(jnp.bfloat16), w2_stk,
                     preferred_element_type=jnp.float32)                 # [N, P]
    node_probs = jax.nn.sigmoid(logits + b2)                             # [N, P] f32

    # ---- Stage 2: autoencoder standardization (bf16 MXU, f32 accumulate) ------------
    enc_w = wts_ref[cfg.ENCW_R:cfg.ENCW_R + P, 0:AH]                     # [P, AH] bf16
    dec_w = wts_ref[cfg.DECW_R:cfg.DECW_R + AH, 0:P]                     # [AH, P] bf16
    enc_b = pack_ref[cfg.ENCB_R:cfg.ENCB_R + 1, 0:AH]                    # [1, AH] f32
    dec_b = pack_ref[cfg.DECB_R:cfg.DECB_R + 1, 0:P]                     # [1, P]  f32

    z = jnp.maximum(jnp.dot(node_probs.astype(jnp.bfloat16), enc_w,
                            preferred_element_type=jnp.float32) + enc_b, 0.0)
    std = jax.nn.sigmoid(jnp.dot(z.astype(jnp.bfloat16), dec_w,
                                 preferred_element_type=jnp.float32) + dec_b)   # [N, P]

    # ---- meta classifier: VPU multiply + lane reduction (no [*,2] MXU output) -------
    mw0 = pack_ref[cfg.MW_R:cfg.MW_R + N, 0:P]                           # class-0 weights [N, P]
    mw1 = pack_ref[cfg.MW_R + N:cfg.MW_R + 2 * N, 0:P]                   # class-1 weights [N, P]
    mb = pack_ref[cfg.MB_R:cfg.MB_R + 1, 0:2]                            # [1, 2]

    def _logit(w):
        r = jnp.sum(std * w, axis=1, keepdims=True)                      # [N, 1] lane reduce
        return jnp.sum(r, axis=0, keepdims=True)                         # [1, 1]

    l0 = _logit(mw0) + mb[:, 0:1]
    l1 = _logit(mw1) + mb[:, 1:2]

    # softmax over the 2 classes, emitted as one lane-dense 128-wide row (lanes >=2 are 0)
    lane = jax.lax.broadcasted_iota(jnp.int32, (1, P), 1)
    logit_row = jnp.where(lane == 0, l0, jnp.where(lane == 1, l1, jnp.float32(NEG_FILL)))
    m = jnp.max(logit_row, axis=-1, keepdims=True)
    e = jnp.exp(logit_row - m)
    pred_row = e * pl.reciprocal(jnp.sum(e, axis=-1, keepdims=True), approx=True)

    # ---- single unmasked full-tile store: [node_probs rows | softmax row | zero pad] -
    pad = jnp.zeros((cfg.OUT_ROWS - (N + 1), P), jnp.float32)
    out_ref[...] = jnp.concatenate([node_probs, pred_row, pad], axis=0)  # [OUT_ROWS, P]


# ----------------------------- wrapper ---------------------------------------
def multilog_forward(node_event_ids, packed, cfg):
    """node_event_ids: int32 [B, N, S] pre-tokenized event ids per window & node."""
    B, n, s = node_event_ids.shape
    assert (n, s) == (cfg.N, cfg.S), f"expected {(cfg.N, cfg.S)} nodes/seq, got {(n, s)}"
    ids_flat = node_event_ids.reshape(-1).astype(jnp.int32)   # 1D SMEM (tiny, padded ~256 B)
    wts, pack = packed["wts"], packed["pack"]

    grid_spec = pltpu.PrefetchScalarGridSpec(
        num_scalar_prefetch=1,                                  # ids -> SMEM, read as scalars
        grid=(B,),
        in_specs=[
            # constant block index -> weights DMA'd once and stay VMEM-resident across windows
            pl.BlockSpec(wts.shape, lambda b, ids: (0, 0)),
            pl.BlockSpec(pack.shape, lambda b, ids: (0, 0)),
        ],
        out_specs=pl.BlockSpec((None, cfg.OUT_ROWS, cfg.P), lambda b, ids: (b, 0, 0)),
    )
    out = pl.pallas_call(
        functools.partial(multilog_kernel, cfg=cfg),
        out_shape=jax.ShapeDtypeStruct((B, cfg.OUT_ROWS, cfg.P), jnp.float32),
        grid_spec=grid_spec,
        compiler_params=pltpu.CompilerParams(dimension_semantics=("parallel",)),
    )(ids_flat, wts, pack)

    node_probs = out[:, :cfg.N, :]          # all_node_probabilities [B, N, P]
    cluster_pred = out[:, cfg.N, 0:2]       # cluster softmax (Normal / Anomalous) [B, 2]
    return cluster_pred, node_probs


# ----------------------------- parameter packing ------------------------------
def pack_params(p, cfg):
    N, E, H, P, AH = cfg.N, cfg.E, cfg.H, cfg.P, cfg.AH

    # bf16 slab (128 lanes): all MXU operands, incl. the embedding table
    wts = jnp.zeros((cfg.WROWS, LANE), jnp.bfloat16)

    def putw(buf, row, arr):
        r, c = arr.shape
        return buf.at[row:row + r, 0:c].set(arr.astype(jnp.bfloat16))

    w1_cat = jnp.transpose(p["w1"], (1, 0, 2)).reshape(E, N * H)      # [E, N*H] lane-concatenated
    w2_stk = p["w2"].reshape(N * H, P)                                # [N*H, P] row-stacked per node
    wts = putw(wts, cfg.EMB_R, p["emb_table"])                        # [V, E]
    wts = putw(wts, cfg.W1_R, w1_cat)
    wts = putw(wts, cfg.W2_R, w2_stk)
    wts = putw(wts, cfg.ENCW_R, p["enc_w"])                           # [P, AH]
    wts = putw(wts, cfg.DECW_R, p["dec_w"])                           # [AH, P]

    # f32 slab (128 lanes): biases + meta classifier (element-wise math stays f32)
    pack = jnp.zeros((cfg.PROWS, LANE), jnp.float32)

    def putp(buf, row, arr):
        r, c = arr.shape
        return buf.at[row:row + r, 0:c].set(arr.astype(jnp.float32))

    # layer-1 bias in block-diagonal form with -1e30 off-block fill (ReLU kills off-block)
    b1_bd = jnp.full((N, N * H), NEG_FILL, jnp.float32)
    for n in range(N):
        b1_bd = b1_bd.at[n, n * H:(n + 1) * H].set(p["b1"][n])
    pack = putp(pack, cfg.B1_R, b1_bd)
    pack = putp(pack, cfg.B2_R, p["b2"])                              # [N, P]
    pack = putp(pack, cfg.ENCB_R, p["enc_b"])                         # [1, AH]
    pack = putp(pack, cfg.DECB_R, p["dec_b"])                         # [1, P]
    pack = putp(pack, cfg.MB_R, p["meta_b"])                          # [1, 2]
    pack = putp(pack, cfg.MW_R, p["meta_w"].reshape(2 * N, P))        # class-major [2N, P]
    return {"wts": wts, "pack": pack}


# ----------------------------- logical params / reference ---------------------
def init_params(key, *, num_nodes, vocab, emb_dim, hidden, prob_list, ae_hidden):
    ks = jax.random.split(key, 6)
    s = lambda k, shape, fan: jax.random.normal(k, shape, jnp.float32) / jnp.sqrt(fan)
    return {
        "emb_table": s(ks[0], (vocab, emb_dim), emb_dim),
        # per-node standalone estimator MLPs
        "w1": s(ks[1], (num_nodes, emb_dim, hidden), emb_dim),
        "b1": jnp.zeros((num_nodes, hidden), jnp.float32),
        "w2": s(ks[2], (num_nodes, hidden, prob_list), hidden),
        "b2": jnp.zeros((num_nodes, prob_list), jnp.float32),
        # shared autoencoder (probability-list standardization)
        "enc_w": s(ks[3], (prob_list, ae_hidden), prob_list),
        "enc_b": jnp.zeros((1, ae_hidden), jnp.float32),
        "dec_w": s(ks[4], (ae_hidden, prob_list), ae_hidden),
        "dec_b": jnp.zeros((1, prob_list), jnp.float32),
        # meta classifier, class-major layout [2, N, P]
        "meta_w": s(ks[5], (2, num_nodes, prob_list), num_nodes * prob_list),
        "meta_b": jnp.zeros((1, 2), jnp.float32),
    }


def multilog_ref(node_event_ids, p):
    """Pure-JAX f32 reference of the same forward pass (single window, ids [N, S])."""
    pooled = jnp.mean(p["emb_table"][node_event_ids], axis=1)                 # [N, E]
    h = jax.nn.relu(jnp.einsum('ne,neh->nh', pooled, p["w1"]) + p["b1"])
    probs = jax.nn.sigmoid(jnp.einsum('nh,nhp->np', h, p["w2"]) + p["b2"])    # [N, P]
    z = jax.nn.relu(probs @ p["enc_w"] + p["enc_b"])
    std = jax.nn.sigmoid(z @ p["dec_w"] + p["dec_b"])                         # [N, P]
    logits = jnp.einsum('np,cnp->c', std, p["meta_w"])[None, :] + p["meta_b"]
    return jax.nn.softmax(logits, axis=-1), probs


# ----------------------------- setup / main -----------------------------------
if __name__ == "__main__":
    B = 4                                   # log windows (batch grid axis)
    NUM_NODES, SEQ = 2, 8
    VOCAB, EMB_DIM, HIDDEN = 50, 32, 32
    PROB_LIST, AE_HIDDEN = 128, 32

    cfg = make_cfg(num_nodes=NUM_NODES, seq=SEQ, vocab=VOCAB, emb_dim=EMB_DIM,
                   hidden=HIDDEN, prob_list=PROB_LIST, ae_hidden=AE_HIDDEN)

    key = jax.random.PRNGKey(0)
    k_params, k_ids = jax.random.split(key)
    params = init_params(k_params, num_nodes=NUM_NODES, vocab=VOCAB, emb_dim=EMB_DIM,
                         hidden=HIDDEN, prob_list=PROB_LIST, ae_hidden=AE_HIDDEN)
    packed = pack_params(params, cfg)       # packed once, outside the forward hot path

    # "node_logs": pre-tokenized event ids per window & node (string parsing untranslatable).
    node_event_ids = jax.random.randint(k_ids, (B, NUM_NODES, SEQ), 0, VOCAB, jnp.int32)

    cluster_pred, node_probs = multilog_forward(node_event_ids, packed, cfg)
    jax.block_until_ready((cluster_pred, node_probs))

    assert cluster_pred.shape == (B, 2)
    assert node_probs.shape == (B, NUM_NODES, PROB_LIST)
    assert bool(jnp.isfinite(cluster_pred).all()) and bool(jnp.isfinite(node_probs).all())

    # Pure-JAX reference check (bf16 matmul weights + approx reciprocal -> loose tolerance).
    ref_pred, ref_probs = jax.vmap(lambda ids: multilog_ref(ids, params))(node_event_ids)
    ref_pred = ref_pred.reshape(B, 2)
    assert bool(jnp.allclose(node_probs, ref_probs, atol=2e-2, rtol=0.0))
    assert bool(jnp.allclose(cluster_pred, ref_pred, atol=2e-2, rtol=0.0))

    print("KERNEL_OK")
</pallas_src>

<mosaic_0001>
module attributes {stable_mosaic.version = 11 : i64} {
  func.func @multilog_kernel(%arg0: i32, %arg1: memref<64xi32, #tpu.memory_space<smem>>, %arg2: memref<320x128xbf16, #tpu.memory_space<vmem>>, %arg3: memref<48x128xf32, #tpu.memory_space<vmem>>, %arg4: memref<1x8x128xf32, #tpu.memory_space<vmem>>) attributes {dimension_semantics = [#tpu.dimension_semantics<parallel>], iteration_bounds = array<i64: 4>, scalar_prefetch = 1 : i64, scratch_operands = 0 : i64, tpu.core_type = #tpu.core_type<tc>, window_params = [{pipeline_mode = #tpu.pipeline_mode<synchronous>, transform_indices = @transform_0, window_bounds = array<i64: 320, 128>}, {pipeline_mode = #tpu.pipeline_mode<synchronous>, transform_indices = @transform_1, window_bounds = array<i64: 48, 128>}, {transform_indices = @transform_2, window_bounds = array<i64: 1, 8, 128>}]} {
    %c16_i32 = arith.constant 16 : i32
    %0 = arith.muli %arg0, %c16_i32 : i32
    %1 = tpu.iota {dimensions = array<i32: 1>} : vector<1x64xi32>
    %cst = arith.constant 0.000000e+00 : f32
    %2 = vector.broadcast %cst : f32 to vector<1x64xf32>
    %c0_i32 = arith.constant 0 : i32
    %3 = arith.addi %0, %c0_i32 : i32
    %c0_i32_0 = arith.constant 0 : i32
    %4 = arith.addi %3, %c0_i32_0 : i32
    %5 = arith.index_cast %4 : i32 to index
    %6 = memref.load %arg1[%5] : memref<64xi32, #tpu.memory_space<smem>>
    %7 = vector.broadcast %6 : i32 to vector<1x64xi32>
    %8 = arith.cmpi eq, %1, %7 : vector<1x64xi32>
    %9 = arith.extui %8 : vector<1x64xi1> to vector<1x64xi32>
    %10 = arith.sitofp %9 : vector<1x64xi32> to vector<1x64xf32>
    %11 = arith.addf %2, %10 : vector<1x64xf32>
    %c0_i32_1 = arith.constant 0 : i32
    %12 = arith.addi %0, %c0_i32_1 : i32
    %c1_i32 = arith.constant 1 : i32
    %13 = arith.addi %12, %c1_i32 : i32
    %14 = arith.index_cast %13 : i32 to index
    %15 = memref.load %arg1[%14] : memref<64xi32, #tpu.memory_space<smem>>
    %16 = vector.broadcast %15 : i32 to vector<1x64xi32>
    %17 = arith.cmpi eq, %1, %16 : vector<1x64xi32>
    %18 = arith.extui %17 : vector<1x64xi1> to vector<1x64xi32>
    %19 = arith.sitofp %18 : vector<1x64xi32> to vector<1x64xf32>
    %20 = arith.addf %11, %19 : vector<1x64xf32>
    %c0_i32_2 = arith.constant 0 : i32
    %21 = arith.addi %0, %c0_i32_2 : i32
    %c2_i32 = arith.constant 2 : i32
    %22 = arith.addi %21, %c2_i32 : i32
    %23 = arith.index_cast %22 : i32 to index
    %24 = memref.load %arg1[%23] : memref<64xi32, #tpu.memory_space<smem>>
    %25 = vector.broadcast %24 : i32 to vector<1x64xi32>
    %26 = arith.cmpi eq, %1, %25 : vector<1x64xi32>
    %27 = arith.extui %26 : vector<1x64xi1> to vector<1x64xi32>
    %28 = arith.sitofp %27 : vector<1x64xi32> to vector<1x64xf32>
    %29 = arith.addf %20, %28 : vector<1x64xf32>
    %c0_i32_3 = arith.constant 0 : i32
    %30 = arith.addi %0, %c0_i32_3 : i32
    %c3_i32 = arith.constant 3 : i32
    %31 = arith.addi %30, %c3_i32 : i32
    %32 = arith.index_cast %31 : i32 to index
    %33 = memref.load %arg1[%32] : memref<64xi32, #tpu.memory_space<smem>>
    %34 = vector.broadcast %33 : i32 to vector<1x64xi32>
    %35 = arith.cmpi eq, %1, %34 : vector<1x64xi32>
    %36 = arith.extui %35 : vector<1x64xi1> to vector<1x64xi32>
    %37 = arith.sitofp %36 : vector<1x64xi32> to vector<1x64xf32>
    %38 = arith.addf %29, %37 : vector<1x64xf32>
    %c0_i32_4 = arith.constant 0 : i32
    %39 = arith.addi %0, %c0_i32_4 : i32
    %c4_i32 = arith.constant 4 : i32
    %40 = arith.addi %39, %c4_i32 : i32
    %41 = arith.index_cast %40 : i32 to index
    %42 = memref.load %arg1[%41] : memref<64xi32, #tpu.memory_space<smem>>
    %43 = vector.broadcast %42 : i32 to vector<1x64xi32>
    %44 = arith.cmpi eq, %1, %43 : vector<1x64xi32>
    %45 = arith.extui %44 : vector<1x64xi1> to vector<1x64xi32>
    %46 = arith.sitofp %45 : vector<1x64xi32> to vector<1x64xf32>
    %47 = arith.addf %38, %46 : vector<1x64xf32>
    %c0_i32_5 = arith.constant 0 : i32
    %48 = arith.addi %0, %c0_i32_5 : i32
    %c5_i32 = arith.constant 5 : i32
    %49 = arith.addi %48, %c5_i32 : i32
    %50 = arith.index_cast %49 : i32 to index
    %51 = memref.load %arg1[%50] : memref<64xi32, #tpu.memory_space<smem>>
    %52 = vector.broadcast %51 : i32 to vector<1x64xi32>
    %53 = arith.cmpi eq, %1, %52 : vector<1x64xi32>
    %54 = arith.extui %53 : vector<1x64xi1> to vector<1x64xi32>
    %55 = arith.sitofp %54 : vector<1x64xi32> to vector<1x64xf32>
    %56 = arith.addf %47, %55 : vector<1x64xf32>
    %c0_i32_6 = arith.constant 0 : i32
    %57 = arith.addi %0, %c0_i32_6 : i32
    %c6_i32 = arith.constant 6 : i32
    %58 = arith.addi %57, %c6_i32 : i32
    %59 = arith.index_cast %58 : i32 to index
    %60 = memref.load %arg1[%59] : memref<64xi32, #tpu.memory_space<smem>>
    %61 = vector.broadcast %60 : i32 to vector<1x64xi32>
    %62 = arith.cmpi eq, %1, %61 : vector<1x64xi32>
    %63 = arith.extui %62 : vector<1x64xi1> to vector<1x64xi32>
    %64 = arith.sitofp %63 : vector<1x64xi32> to vector<1x64xf32>
    %65 = arith.addf %56, %64 : vector<1x64xf32>
    %c0_i32_7 = arith.constant 0 : i32
    %66 = arith.addi %0, %c0_i32_7 : i32
    %c7_i32 = arith.constant 7 : i32
    %67 = arith.addi %66, %c7_i32 : i32
    %68 = arith.index_cast %67 : i32 to index
    %69 = memref.load %arg1[%68] : memref<64xi32, #tpu.memory_space<smem>>
    %70 = vector.broadcast %69 : i32 to vector<1x64xi32>
    %71 = arith.cmpi eq, %1, %70 : vector<1x64xi32>
    %72 = arith.extui %71 : vector<1x64xi1> to vector<1x64xi32>
    %73 = arith.sitofp %72 : vector<1x64xi32> to vector<1x64xf32>
    %74 = arith.addf %65, %73 : vector<1x64xf32>
    %cst_8 = arith.constant 1.250000e-01 : f32
    %75 = vector.broadcast %cst_8 : f32 to vector<1x64xf32>
    %76 = arith.mulf %74, %75 : vector<1x64xf32>
    %cst_9 = arith.constant 0.000000e+00 : f32
    %77 = vector.broadcast %cst_9 : f32 to vector<1x64xf32>
    %c8_i32 = arith.constant 8 : i32
    %78 = arith.addi %0, %c8_i32 : i32
    %c0_i32_10 = arith.constant 0 : i32
    %79 = arith.addi %78, %c0_i32_10 : i32
    %80 = arith.index_cast %79 : i32 to index
    %81 = memref.load %arg1[%80] : memref<64xi32, #tpu.memory_space<smem>>
    %82 = vector.broadcast %81 : i32 to vector<1x64xi32>
    %83 = arith.cmpi eq, %1, %82 : vector<1x64xi32>
    %84 = arith.extui %83 : vector<1x64xi1> to vector<1x64xi32>
    %85 = arith.sitofp %84 : vector<1x64xi32> to vector<1x64xf32>
    %86 = arith.addf %77, %85 : vector<1x64xf32>
    %c8_i32_11 = arith.constant 8 : i32
    %87 = arith.addi %0, %c8_i32_11 : i32
    %c1_i32_12 = arith.constant 1 : i32
    %88 = arith.addi %87, %c1_i32_12 : i32
    %89 = arith.index_cast %88 : i32 to index
    %90 = memref.load %arg1[%89] : memref<64xi32, #tpu.memory_space<smem>>
    %91 = vector.broadcast %90 : i32 to vector<1x64xi32>
    %92 = arith.cmpi eq, %1, %91 : vector<1x64xi32>
    %93 = arith.extui %92 : vector<1x64xi1> to vector<1x64xi32>
    %94 = arith.sitofp %93 : vector<1x64xi32> to vector<1x64xf32>
    %95 = arith.addf %86, %94 : vector<1x64xf32>
    %c8_i32_13 = arith.constant 8 : i32
    %96 = arith.addi %0, %c8_i32_13 : i32
    %c2_i32_14 = arith.constant 2 : i32
    %97 = arith.addi %96, %c2_i32_14 : i32
    %98 = arith.index_cast %97 : i32 to index
    %99 = memref.load %arg1[%98] : memref<64xi32, #tpu.memory_space<smem>>
    %100 = vector.broadcast %99 : i32 to vector<1x64xi32>
    %101 = arith.cmpi eq, %1, %100 : vector<1x64xi32>
    %102 = arith.extui %101 : vector<1x64xi1> to vector<1x64xi32>
    %103 = arith.sitofp %102 : vector<1x64xi32> to vector<1x64xf32>
    %104 = arith.addf %95, %103 : vector<1x64xf32>
    %c8_i32_15 = arith.constant 8 : i32
    %105 = arith.addi %0, %c8_i32_15 : i32
    %c3_i32_16 = arith.constant 3 : i32
    %106 = arith.addi %105, %c3_i32_16 : i32
    %107 = arith.index_cast %106 : i32 to index
    %108 = memref.load %arg1[%107] : memref<64xi32, #tpu.memory_space<smem>>
    %109 = vector.broadcast %108 : i32 to vector<1x64xi32>
    %110 = arith.cmpi eq, %1, %109 : vector<1x64xi32>
    %111 = arith.extui %110 : vector<1x64xi1> to vector<1x64xi32>
    %112 = arith.sitofp %111 : vector<1x64xi32> to vector<1x64xf32>
    %113 = arith.addf %104, %112 : vector<1x64xf32>
    %c8_i32_17 = arith.constant 8 : i32
    %114 = arith.addi %0, %c8_i32_17 : i32
    %c4_i32_18 = arith.constant 4 : i32
    %115 = arith.addi %114, %c4_i32_18 : i32
    %116 = arith.index_cast %115 : i32 to index
    %117 = memref.load %arg1[%116] : memref<64xi32, #tpu.memory_space<smem>>
    %118 = vector.broadcast %117 : i32 to vector<1x64xi32>
    %119 = arith.cmpi eq, %1, %118 : vector<1x64xi32>
    %120 = arith.extui %119 : vector<1x64xi1> to vector<1x64xi32>
    %121 = arith.sitofp %120 : vector<1x64xi32> to vector<1x64xf32>
    %122 = arith.addf %113, %121 : vector<1x64xf32>
    %c8_i32_19 = arith.constant 8 : i32
    %123 = arith.addi %0, %c8_i32_19 : i32
    %c5_i32_20 = arith.constant 5 : i32
    %124 = arith.addi %123, %c5_i32_20 : i32
    %125 = arith.index_cast %124 : i32 to index
    %126 = memref.load %arg1[%125] : memref<64xi32, #tpu.memory_space<smem>>
    %127 = vector.broadcast %126 : i32 to vector<1x64xi32>
    %128 = arith.cmpi eq, %1, %127 : vector<1x64xi32>
    %129 = arith.extui %128 : vector<1x64xi1> to vector<1x64xi32>
    %130 = arith.sitofp %129 : vector<1x64xi32> to vector<1x64xf32>
    %131 = arith.addf %122, %130 : vector<1x64xf32>
    %c8_i32_21 = arith.constant 8 : i32
    %132 = arith.addi %0, %c8_i32_21 : i32
    %c6_i32_22 = arith.constant 6 : i32
    %133 = arith.addi %132, %c6_i32_22 : i32
    %134 = arith.index_cast %133 : i32 to index
    %135 = memref.load %arg1[%134] : memref<64xi32, #tpu.memory_space<smem>>
    %136 = vector.broadcast %135 : i32 to vector<1x64xi32>
    %137 = arith.cmpi eq, %1, %136 : vector<1x64xi32>
    %138 = arith.extui %137 : vector<1x64xi1> to vector<1x64xi32>
    %139 = arith.sitofp %138 : vector<1x64xi32> to vector<1x64xf32>
    %140 = arith.addf %131, %139 : vector<1x64xf32>
    %c8_i32_23 = arith.constant 8 : i32
    %141 = arith.addi %0, %c8_i32_23 : i32
    %c7_i32_24 = arith.constant 7 : i32
    %142 = arith.addi %141, %c7_i32_24 : i32
    %143 = arith.index_cast %142 : i32 to index
    %144 = memref.load %arg1[%143] : memref<64xi32, #tpu.memory_space<smem>>
    %145 = vector.broadcast %144 : i32 to vector<1x64xi32>
    %146 = arith.cmpi eq, %1, %145 : vector<1x64xi32>
    %147 = arith.extui %146 : vector<1x64xi1> to vector<1x64xi32>
    %148 = arith.sitofp %147 : vector<1x64xi32> to vector<1x64xf32>
    %149 = arith.addf %140, %148 : vector<1x64xf32>
    %cst_25 = arith.constant 1.250000e-01 : f32
    %150 = vector.broadcast %cst_25 : f32 to vector<1x64xf32>
    %151 = arith.mulf %149, %150 : vector<1x64xf32>
    %152 = tpu.concatenate %76, %151 in 0 : vector<1x64xf32>, vector<1x64xf32> -> vector<2x64xf32>
    %c0 = arith.constant 0 : index
    %c0_26 = arith.constant 0 : index
    %153 = vector.load %arg2[%c0, %c0_26] : memref<320x128xbf16, #tpu.memory_space<vmem>>, vector<64x32xbf16>
    %154 = arith.truncf %152 : vector<2x64xf32> to vector<2x64xbf16>
    %cst_27 = arith.constant dense<0.000000e+00> : vector<2x32xf32>
    %155 = tpu.matmul %154, %153, %cst_27 {dimension_numbers = #tpu.dot_dimension_numbers<[1], [0], [0], [1], [0, 0, 1, 1], [], []>} : vector<2x64xbf16>, vector<64x32xbf16>, vector<2x32xf32> -> vector<2x32xf32>
    %c64 = arith.constant 64 : index
    %c0_28 = arith.constant 0 : index
    %156 = vector.load %arg2[%c64, %c0_28] : memref<320x128xbf16, #tpu.memory_space<vmem>>, vector<32x64xbf16>
    %c96 = arith.constant 96 : index
    %c0_29 = arith.constant 0 : index
    %157 = vector.load %arg2[%c96, %c0_29] : memref<320x128xbf16, #tpu.memory_space<vmem>>, vector<64x128xbf16>
    %c0_30 = arith.constant 0 : index
    %c0_31 = arith.constant 0 : index
    %158 = vector.load %arg3[%c0_30, %c0_31] : memref<48x128xf32, #tpu.memory_space<vmem>>, vector<2x64xf32>
    %c8 = arith.constant 8 : index
    %c0_32 = arith.constant 0 : index
    %159 = vector.load %arg3[%c8, %c0_32] : memref<48x128xf32, #tpu.memory_space<vmem>>, vector<2x128xf32>
    %160 = arith.truncf %155 : vector<2x32xf32> to vector<2x32xbf16>
    %cst_33 = arith.constant dense<0.000000e+00> : vector<2x64xf32>
    %161 = tpu.matmul %160, %156, %cst_33 {dimension_numbers = #tpu.dot_dimension_numbers<[1], [0], [0], [1], [0, 0, 1, 1], [], []>} : vector<2x32xbf16>, vector<32x64xbf16>, vector<2x64xf32> -> vector<2x64xf32>
    %162 = arith.addf %161, %158 : vector<2x64xf32>
    %cst_34 = arith.constant 0.000000e+00 : f32
    %163 = vector.broadcast %cst_34 : f32 to vector<2x64xf32>
    %164 = arith.maximumf %162, %163 : vector<2x64xf32>
    %165 = arith.truncf %164 : vector<2x64xf32> to vector<2x64xbf16>
    %cst_35 = arith.constant dense<0.000000e+00> : vector<2x128xf32>
    %166 = tpu.matmul %165, %157, %cst_35 {dimension_numbers = #tpu.dot_dimension_numbers<[1], [0], [0], [1], [0, 0, 1, 1], [], []>} : vector<2x64xbf16>, vector<64x128xbf16>, vector<2x128xf32> -> vector<2x128xf32>
    %167 = arith.addf %166, %159 : vector<2x128xf32>
    %168 = arith.negf %167 : vector<2x128xf32>
    %169 = math.exp %168 : vector<2x128xf32>
    %cst_36 = arith.constant 1.000000e+00 : f32
    %170 = vector.broadcast %cst_36 : f32 to vector<2x128xf32>
    %171 = arith.addf %170, %169 : vector<2x128xf32>
    %172 = arith.divf %170, %171 : vector<2x128xf32>
    %c160 = arith.constant 160 : index
    %c0_37 = arith.constant 0 : index
    %173 = vector.load %arg2[%c160, %c0_37] : memref<320x128xbf16, #tpu.memory_space<vmem>>, vector<128x32xbf16>
    %c288 = arith.constant 288 : index
    %c0_38 = arith.constant 0 : index
    %174 = vector.load %arg2[%c288, %c0_38] : memref<320x128xbf16, #tpu.memory_space<vmem>>, vector<32x128xbf16>
    %c16 = arith.constant 16 : index
    %c0_39 = arith.constant 0 : index
    %175 = vector.load %arg3[%c16, %c0_39] : memref<48x128xf32, #tpu.memory_space<vmem>>, vector<1x32xf32>
    %c24 = arith.constant 24 : index
    %c0_40 = arith.constant 0 : index
    %176 = vector.load %arg3[%c24, %c0_40] : memref<48x128xf32, #tpu.memory_space<vmem>>, vector<1x128xf32>
    %177 = arith.truncf %172 : vector<2x128xf32> to vector<2x128xbf16>
    %cst_41 = arith.constant dense<0.000000e+00> : vector<2x32xf32>
    %178 = tpu.matmul %177, %173, %cst_41 {dimension_numbers = #tpu.dot_dimension_numbers<[1], [0], [0], [1], [0, 0, 1, 1], [], []>} : vector<2x128xbf16>, vector<128x32xbf16>, vector<2x32xf32> -> vector<2x32xf32>
    %179 = vector.broadcast %175 : vector<1x32xf32> to vector<2x32xf32>
    %180 = arith.addf %178, %179 : vector<2x32xf32>
    %cst_42 = arith.constant 0.000000e+00 : f32
    %181 = vector.broadcast %cst_42 : f32 to vector<2x32xf32>
    %182 = arith.maximumf %180, %181 : vector<2x32xf32>
    %183 = arith.truncf %182 : vector<2x32xf32> to vector<2x32xbf16>
    %cst_43 = arith.constant dense<0.000000e+00> : vector<2x128xf32>
    %184 = tpu.matmul %183, %174, %cst_43 {dimension_numbers = #tpu.dot_dimension_numbers<[1], [0], [0], [1], [0, 0, 1, 1], [], []>} : vector<2x32xbf16>, vector<32x128xbf16>, vector<2x128xf32> -> vector<2x128xf32>
    %185 = vector.broadcast %176 : vector<1x128xf32> to vector<2x128xf32>
    %186 = arith.addf %184, %185 : vector<2x128xf32>
    %187 = arith.negf %186 : vector<2x128xf32>
    %188 = math.exp %187 : vector<2x128xf32>
    %cst_44 = arith.constant 1.000000e+00 : f32
    %189 = vector.broadcast %cst_44 : f32 to vector<2x128xf32>
    %190 = arith.addf %189, %188 : vector<2x128xf32>
    %191 = arith.divf %189, %190 : vector<2x128xf32>
    %c40 = arith.constant 40 : index
    %c0_45 = arith.constant 0 : index
    %192 = vector.load %arg3[%c40, %c0_45] : memref<48x128xf32, #tpu.memory_space<vmem>>, vector<2x128xf32>
    %c42 = arith.constant 42 : index
    %c0_46 = arith.constant 0 : index
    %193 = vector.load %arg3[%c42, %c0_46] : memref<48x128xf32, #tpu.memory_space<vmem>>, vector<2x128xf32>
    %c32 = arith.constant 32 : index
    %c0_47 = arith.constant 0 : index
    %194 = vector.load %arg3[%c32, %c0_47] : memref<48x128xf32, #tpu.memory_space<vmem>>, vector<1x2xf32>
    %195 = arith.mulf %191, %192 : vector<2x128xf32>
    %cst_48 = arith.constant dense<0.000000e+00> : vector<2xf32>
    %196 = vector.multi_reduction <add>, %195, %cst_48 [1] : vector<2x128xf32> to vector<2xf32>
    %197 = vector.shape_cast %196 : vector<2xf32> to vector<2x1xf32>
    %cst_49 = arith.constant dense<0.000000e+00> : vector<1xf32>
    %198 = vector.multi_reduction <add>, %197, %cst_49 [0] : vector<2x1xf32> to vector<1xf32>
    %199 = vector.shape_cast %198 : vector<1xf32> to vector<1x1xf32>
    %200 = vector.extract_strided_slice %194 {offsets = [0, 0], sizes = [1, 1], strides = [1, 1]} : vector<1x2xf32> to vector<1x1xf32>
    %201 = arith.addf %199, %200 : vector<1x1xf32>
    %202 = arith.mulf %191, %193 : vector<2x128xf32>
    %cst_50 = arith.constant dense<0.000000e+00> : vector<2xf32>
    %203 = vector.multi_reduction <add>, %202, %cst_50 [1] : vector<2x128xf32> to vector<2xf32>
    %204 = vector.shape_cast %203 : vector<2xf32> to vector<2x1xf32>
    %cst_51 = arith.constant dense<0.000000e+00> : vector<1xf32>
    %205 = vector.multi_reduction <add>, %204, %cst_51 [0] : vector<2x1xf32> to vector<1xf32>
    %206 = vector.shape_cast %205 : vector<1xf32> to vector<1x1xf32>
    %207 = vector.extract_strided_slice %194 {offsets = [0, 1], sizes = [1, 1], strides = [1, 1]} : vector<1x2xf32> to vector<1x1xf32>
    %208 = arith.addf %206, %207 : vector<1x1xf32>
    %209 = tpu.iota {dimensions = array<i32: 1>} : vector<1x128xi32>
    %c0_i32_52 = arith.constant 0 : i32
    %210 = vector.broadcast %c0_i32_52 : i32 to vector<1x128xi32>
    %211 = arith.cmpi eq, %209, %210 : vector<1x128xi32>
    %c1_i32_53 = arith.constant 1 : i32
    %212 = vector.broadcast %c1_i32_53 : i32 to vector<1x128xi32>
    %213 = arith.cmpi eq, %209, %212 : vector<1x128xi32>
    %cst_54 = arith.constant -1.000000e+30 : f32
    %214 = vector.shape_cast %208 : vector<1x1xf32> to vector<1x1xf32>
    %215 = vector.broadcast %214 : vector<1x1xf32> to vector<1x128xf32>
    %216 = vector.broadcast %cst_54 : f32 to vector<1x128xf32>
    %217 = arith.select %213, %215, %216 : vector<1x128xi1>, vector<1x128xf32>
    %218 = vector.shape_cast %201 : vector<1x1xf32> to vector<1x1xf32>
    %219 = vector.broadcast %218 : vector<1x1xf32> to vector<1x128xf32>
    %220 = arith.select %211, %219, %217 : vector<1x128xi1>, vector<1x128xf32>
    %cst_55 = arith.constant dense<0xFF800000> : vector<1xf32>
    %221 = vector.multi_reduction <maximumf>, %220, %cst_55 [1] : vector<1x128xf32> to vector<1xf32>
    %222 = vector.shape_cast %221 : vector<1xf32> to vector<1x1xf32>
    %223 = vector.broadcast %222 : vector<1x1xf32> to vector<1x128xf32>
    %224 = arith.subf %220, %223 : vector<1x128xf32>
    %225 = math.exp %224 : vector<1x128xf32>
    %cst_56 = arith.constant dense<0.000000e+00> : vector<1xf32>
    %226 = vector.multi_reduction <add>, %225, %cst_56 [1] : vector<1x128xf32> to vector<1xf32>
    %227 = vector.shape_cast %226 : vector<1xf32> to vector<1x1xf32>
    %228 = tpu.reciprocal %227 {approx = true} : vector<1x1xf32> -> vector<1x1xf32>
    %229 = vector.broadcast %228 : vector<1x1xf32> to vector<1x128xf32>
    %230 = arith.mulf %225, %229 : vector<1x128xf32>
    %cst_57 = arith.constant 0.000000e+00 : f32
    %231 = vector.broadcast %cst_57 : f32 to vector<5x128xf32>
    %232 = tpu.concatenate %172, %230, %231 in 0 : vector<2x128xf32>, vector<1x128xf32>, vector<5x128xf32> -> vector<8x128xf32>
    %c0_58 = arith.constant 0 : index
    %c0_59 = arith.constant 0 : index
    %c0_60 = arith.constant 0 : index
    %233 = vector.load %arg4[%c0_58, %c0_59, %c0_60] : memref<1x8x128xf32, #tpu.memory_space<vmem>>, vector<1x8x128xf32>
    %234 = vector.shape_cast %233 : vector<1x8x128xf32> to vector<8x128xf32>
    %235 = vector.shape_cast %232 : vector<8x128xf32> to vector<1x8x128xf32>
    tpu.vector_store %arg4[%c0_58, %c0_59, %c0_60], %235 {strides = array<i32>} : memref<1x8x128xf32, #tpu.memory_space<vmem>>, vector<1x8x128xf32>,
    return
  }
  func.func @transform_0(%arg0: i32, %arg1: memref<64xi32, #tpu.memory_space<smem>>) -> (i32, i32) {
    %c0_i32 = arith.constant 0 : i32
    %c0_i32_0 = arith.constant 0 : i32
    %c0_i32_1 = arith.constant 0 : i32
    return %c0_i32, %c0_i32_0 : i32, i32
  }
  func.func @transform_1(%arg0: i32, %arg1: memref<64xi32, #tpu.memory_space<smem>>) -> (i32, i32) {
    %c0_i32 = arith.constant 0 : i32
    %c0_i32_0 = arith.constant 0 : i32
    %c0_i32_1 = arith.constant 0 : i32
    return %c0_i32, %c0_i32_0 : i32, i32
  }
  func.func @transform_2(%arg0: i32, %arg1: memref<64xi32, #tpu.memory_space<smem>>) -> (i32, i32, i32) {
    %c0_i32 = arith.constant 0 : i32
    %c0_i32_0 = arith.constant 0 : i32
    %c0_i32_1 = arith.constant 0 : i32
    return %arg0, %c0_i32, %c0_i32_0 : i32, i32, i32
  }
}

</mosaic_0001>

<llo_original>
// kernel: tpu_custom_call.1
$region0: #{tpu_custom_call.1}
  #allocation0 [shape = 'u32[]', space=smem, size = 0x4, offset = 0x4, fixed_abs, tag = 'smem constant byte address 0x4 - core index']
  #allocation1 [shape = 'u32[144,128]{1,0:T(1,128)}', space=vmem, size = 0x12000, scoped, tag = 'internal scratch']
  #allocation2 [shape = 's32[1]{0}', space=sflag, size = 0x4, scoped, tag = 'scoped memory for tpu_custom_call.1']
  #allocation3 [shape = 'u8[512]{0}', space=smem, size = 0x200, scoped, tag = 'prefetched SMEM operand 0']
  %s0 = inlined_call_operand.hbm [shape: s32[64], index: 0, kind: input, shape index: {}]
  %s1 = inlined_call_operand.hbm [shape: bf16[320,128], index: 1, kind: input, shape index: {}]
  %s2 = inlined_call_operand.hbm [shape: f32[48,128], index: 2, kind: input, shape index: {}]
  %s3 = inlined_call_operand.hbm [shape: f32[4,8,128], index: 3, kind: output, shape index: {}]
  %s4 = sld [smem:[#allocation0]]
  $region49: #{tpu_custom_call.1} parent=0
    _
  %s6 = ssub.s32 1, %s4
  %s7 = scalar_select 0, %s6, %s4
  %9 = dma.hbm_to_smem %s0, 16, [#allocation3], [#allocation2]
  %10 = dma.done [#allocation2], 16
  %11 = sfence
  $region1: #{tpu_custom_call.1} parent=0
    #allocation4 [shape = 'u8[81920]{0}', space=vmem, size = 0x14000, scoped, tag = 'input window, operand 1, single buffered']
    #allocation5 [shape = 's32[2]{0}', space=sflag, size = 0x8, scoped, tag = 'scoped memory for tpu_custom_call.1']
    #allocation6 [shape = 's32[2]{0}', space=sflag, size = 0x8, scoped, tag = 'scoped memory for tpu_custom_call.1']
    #allocation7 [shape = 'u8[24576]{0}', space=vmem, size = 0x6000, scoped, tag = 'input window, operand 2, single buffered']
    #allocation8 [shape = 's32[1]{0}', space=sflag, size = 0x4, scoped, tag = 'scoped memory for tpu_custom_call.1']
    #allocation9 [shape = 'u8[8192]{0}', space=vmem, size = 0x2000, scoped, tag = 'output window, operand 0']
    %12 = vsyncpa [#allocation5], 0
    %13 = vsyncpa [#allocation8], 0
    %14 = vsyncpa [#allocation6], 0
    %s15 = scalar_lea.sflag [#allocation6], 1
    %16 = vsyncpa %s15, 0
    loop: start=0, step=1, limit=6
    $region2: #{tpu_custom_call.1} parent=1 // loop_pre_header
      _
    $region3: #{tpu_custom_call.1} parent=1 // loop_header
      %s18 = sphi 0, %s22
      %p19 = scmp.ge.s32.totalorder %s18, 6
      %s26 = sphi 0, %s26
      %s28 = sphi 0, %s26
      %s29 = sphi 0, %s28
      %s43 = sphi 0, %s29
      %s47 = sphi 0, %s47
      %s49 = sphi 0, %s47
      %s50 = sphi 0, %s49
      %s64 = sphi 0, %s50
      %s70 = sphi 0, %s72
      %s73 = sphi 0, %s70
      %s74 = sphi 0, %s73
      %s90 = sphi 0, %s74
    $region4: #{tpu_custom_call.1} parent=1 // loop_header_branch
      %21 = sbr.rel (%p19) target = $region8
    $region5: #{tpu_custom_call.1} parent=1 // loop_body
      %s23 = ssub.s32 %s18, 1
      %s24 = ssub.s32 %s18, 2
      %s25 = sadd.s32 %s18, 1
      %s27 = sadd.s32 %s26, 1
      %p30 = scmp.eq.s32.totalorder %s18, 3
      %p31 = scmp.ne.s32.totalorder %s26, %s28
      %p32 = scmp.eq.s32.totalorder %s18, 0
      %p33 = por %p31, %p32
      %p34 = scmp.ne.s32.totalorder %s26, %s28
      %p35 = scmp.eq.s32.totalorder %s23, 3
      %p36 = por %p34, %p35
      %p37 = scmp.ne.s32.totalorder %s28, %s29
      %p38 = scmp.eq.s32.totalorder %s23, 0
      %p39 = por %p37, %p38
      %p40 = scmp.ne.s32.totalorder %s28, %s29
      %p41 = scmp.eq.s32.totalorder %s24, 3
      %p42 = por %p40, %p41
      %p44 = scmp.ne.s32.totalorder %s29, %s43
      %p45 = scmp.eq.s32.totalorder %s24, 0
      %p46 = por %p44, %p45
      %s48 = sadd.s32 %s47, 1
      %p51 = scmp.eq.s32.totalorder %s18, 3
      %p52 = scmp.ne.s32.totalorder %s47, %s49
      %p53 = scmp.eq.s32.totalorder %s18, 0
      %p54 = por %p52, %p53
      %p55 = scmp.ne.s32.totalorder %s47, %s49
      %p56 = scmp.eq.s32.totalorder %s23, 3
      %p57 = por %p55, %p56
      %p58 = scmp.ne.s32.totalorder %s49, %s50
      %p59 = scmp.eq.s32.totalorder %s23, 0
      %p60 = por %p58, %p59
      %p61 = scmp.ne.s32.totalorder %s49, %s50
      %p62 = scmp.eq.s32.totalorder %s24, 3
      %p63 = por %p61, %p62
      %p65 = scmp.ne.s32.totalorder %s50, %s64
      %p66 = scmp.eq.s32.totalorder %s24, 0
      %p67 = por %p65, %p66
      %s68 = ssub.s32 %s18, %s25
      %p69 = scmp.eq.s32.totalorder %s68, 0
      %s71 = sadd.s32 %s70, 1
      %s72 = scalar_select %p69, %s70, %s71
      %p75 = pneg %p69
      %p76 = scmp.eq.s32.totalorder %s18, 3
      %p77 = por %p75, %p76
      %p78 = scmp.ne.s32.totalorder %s70, %s73
      %p79 = scmp.eq.s32.totalorder %s18, 0
      %p80 = por %p78, %p79
      %p81 = scmp.ne.s32.totalorder %s70, %s73
      %p82 = scmp.eq.s32.totalorder %s23, 3
      %p83 = por %p81, %p82
      %p84 = scmp.ne.s32.totalorder %s73, %s74
      %p85 = scmp.eq.s32.totalorder %s23, 0
      %p86 = por %p84, %p85
      %p87 = scmp.ne.s32.totalorder %s73, %s74
      %p88 = scmp.eq.s32.totalorder %s24, 3
      %p89 = por %p87, %p88
      %p91 = scmp.ne.s32.totalorder %s74, %s90
      %p92 = scmp.eq.s32.totalorder %s24, 0
      %p93 = por %p91, %p92
      %p94 = scmp.le.s32.totalorder 1, %s18
      %p95 = scmp.lt.s32.totalorder %s18, 5
      %p96 = pnand %p94, %p95
      %p97 = pneg %p96
      // Predicated region
      $region9: #{tpu_custom_call.1} parent=5 // pred_check
        _
      $region10: #{tpu_custom_call.1} parent=5 // pred_check_branch
        %99 = sbr.rel (%p96) target = $region12
      $region11: #{tpu_custom_call.1} parent=5 // pred_region
        %s100 = ssub.s32 %s18, 1
        // Predicated region
        $region13: #{tpu_custom_call.1} parent=11 // pred_check
          %p101 = pneg %p39
        $region14: #{tpu_custom_call.1} parent=11 // pred_check_branch
          %103 = sbr.rel (%p101) target = $region16
        $region15: #{tpu_custom_call.1} parent=11 // pred_region
          %s105 = ssub.s32 2560, 2560
          %106 = vsyncadd [#allocation5], %s105
          %s107 = sshll.u32 [#allocation4], 4
          %s108 = int_to_ptr.vmem [resolvable:$true] %s107
          %113 = dma.hbm_to_vmem [thread:$0]  %s1, 2560, %s108, [#allocation5], 64, 64, 4
        $region16: #{tpu_custom_call.1} parent=11 // pred_fallthru
          _
        // Predicated region
        $region17: #{tpu_custom_call.1} parent=11 // pred_check
          %p114 = pneg %p60
        $region18: #{tpu_custom_call.1} parent=11 // pred_check_branch
          %116 = sbr.rel (%p114) target = $region20
        $region19: #{tpu_custom_call.1} parent=11 // pred_region
          %s118 = ssub.s32 768, 768
          %119 = vsyncadd [#allocation8], %s118
          %s120 = sshll.u32 [#allocation7], 4
          %s121 = int_to_ptr.vmem [resolvable:$true] %s120
          %126 = dma.hbm_to_vmem [thread:$0]  %s2, 768, %s121, [#allocation8], 128, 128, 8
        $region20: #{tpu_custom_call.1} parent=11 // pred_fallthru
          _
      $region12: #{tpu_custom_call.1} parent=5 // pred_fallthru
        _
      %p127 = scmp.lt.s32.totalorder %s18, 4
      // Predicated region
      $region21: #{tpu_custom_call.1} parent=5 // pred_check
        %p128 = pneg %p127
      $region22: #{tpu_custom_call.1} parent=5 // pred_check_branch
        %130 = sbr.rel (%p128) target = $region24
      $region23: #{tpu_custom_call.1} parent=5 // pred_region
        _
      $region24: #{tpu_custom_call.1} parent=5 // pred_fallthru
        _
      %p131 = scmp.le.s32.totalorder 1, %s18
      %p132 = scmp.lt.s32.totalorder %s18, 5
      %p133 = pnand %p131, %p132
      %p134 = pneg %p133
      // Predicated region
      $region25: #{tpu_custom_call.1} parent=5 // pred_check
        _
      $region26: #{tpu_custom_call.1} parent=5 // pred_check_branch
        %136 = sbr.rel (%p133) target = $region28
      $region27: #{tpu_custom_call.1} parent=5 // pred_region
        %s137 = ssub.s32 %s18, 1
        // Predicated region
        $region29: #{tpu_custom_call.1} parent=27 // pred_check
          %p138 = pneg %p39
        $region30: #{tpu_custom_call.1} parent=27 // pred_check_branch
          %140 = sbr.rel (%p138) target = $region32
        $region31: #{tpu_custom_call.1} parent=27 // pred_region
          %141 = dma.done [#allocation5], 2560
        $region32: #{tpu_custom_call.1} parent=27 // pred_fallthru
          _
        // Predicated region
        $region33: #{tpu_custom_call.1} parent=27 // pred_check
          %p142 = pneg %p60
        $region34: #{tpu_custom_call.1} parent=27 // pred_check_branch
          %144 = sbr.rel (%p142) target = $region36
        $region35: #{tpu_custom_call.1} parent=27 // pred_region
          %145 = dma.done [#allocation8], 768
        $region36: #{tpu_custom_call.1} parent=27 // pred_fallthru
          _
        %p146 = pneg %p39
        %p147 = pneg %p36
        %p148 = pneg %p60
        %p149 = pneg %p57
        %p150 = pneg %p86
        %p151 = pneg %p83
        %s152 = sand.u32 %s73, 1
        %s153 = scalar_lea.sflag [#allocation6], %s152
        %s154 = sand.u32 %s73, 1
        %s155 = smul.addr %s154, 8
        %s156 = scalar_lea.vmem [#allocation9], %s155
        %s158 = smul.u32 %s23, 16
        %v159 = vlaneseq
        %v160 = vand.u32 %v159, 127
        %s161 = sld [smem:[#allocation3 + %s158]]
        %v162 = vstv %s161
        %vm163 = vcmp.eq.s32.totalorder %v160, %v162
        %v164 = vsel %vm163, 1, 0
        %v165 = vcvt.s32.f32 %v164
        %v166 = vadd.f32 %v165, 0.0
        %s167 = sadd.s32 %s158, 1
        %s168 = sld [smem:[#allocation3 + %s167]]
        %v169 = vstv %s168
        %vm170 = vcmp.eq.s32.totalorder %v160, %v169
        %v171 = vsel %vm170, 1, 0
        %v172 = vcvt.s32.f32 %v171
        %v173 = vadd.f32 %v166, %v172
        %s174 = sadd.s32 %s158, 2
        %s175 = sld [smem:[#allocation3 + %s174]]
        %v176 = vstv %s175
        %vm177 = vcmp.eq.s32.totalorder %v160, %v176
        %v178 = vsel %vm177, 1, 0
        %v179 = vcvt.s32.f32 %v178
        %v180 = vadd.f32 %v173, %v179
        %s181 = sadd.s32 %s158, 3
        %s182 = sld [smem:[#allocation3 + %s181]]
        %v183 = vstv %s182
        %vm184 = vcmp.eq.s32.totalorder %v160, %v183
        %v185 = vsel %vm184, 1, 0
        %v186 = vcvt.s32.f32 %v185
        %v187 = vadd.f32 %v180, %v186
        %s188 = sadd.s32 %s158, 4
        %s189 = sld [smem:[#allocation3 + %s188]]
        %v190 = vstv %s189
        %vm191 = vcmp.eq.s32.totalorder %v160, %v190
        %v192 = vsel %vm191, 1, 0
        %v193 = vcvt.s32.f32 %v192
        %v194 = vadd.f32 %v187, %v193
        %s195 = sadd.s32 %s158, 5
        %s196 = sld [smem:[#allocation3 + %s195]]
        %v197 = vstv %s196
        %vm198 = vcmp.eq.s32.totalorder %v160, %v197
        %v199 = vsel %vm198, 1, 0
        %v200 = vcvt.s32.f32 %v199
        %v201 = vadd.f32 %v194, %v200
        %s202 = sadd.s32 %s158, 6
        %s203 = sld [smem:[#allocation3 + %s202]]
        %v204 = vstv %s203
        %vm205 = vcmp.eq.s32.totalorder %v160, %v204
        %v206 = vsel %vm205, 1, 0
        %v207 = vcvt.s32.f32 %v206
        %v208 = vadd.f32 %v201, %v207
        %s209 = sadd.s32 %s158, 7
        %s210 = sld [smem:[#allocation3 + %s209]]
        %v211 = vstv %s210
        %vm212 = vcmp.eq.s32.totalorder %v160, %v211
        %v213 = vsel %vm212, 1, 0
        %v214 = vcvt.s32.f32 %v213
        %v215 = vadd.f32 %v208, %v214
        %v216 = vmul.f32 %v215, 0.125
        %s217 = sadd.s32 %s158, 8
        %s218 = sld [smem:[#allocation3 + %s217]]
        %v219 = vstv %s218
        %vm220 = vcmp.eq.s32.totalorder %v160, %v219
        %v221 = vsel %vm220, 1, 0
        %v222 = vcvt.s32.f32 %v221
        %v223 = vadd.f32 %v222, 0.0
        %s224 = sadd.s32 %s158, 9
        %s225 = sld [smem:[#allocation3 + %s224]]
        %v226 = vstv %s225
        %vm227 = vcmp.eq.s32.totalorder %v160, %v226
        %v228 = vsel %vm227, 1, 0
        %v229 = vcvt.s32.f32 %v228
        %v230 = vadd.f32 %v223, %v229
        %s231 = sadd.s32 %s158, 10
        %s232 = sld [smem:[#allocation3 + %s231]]
        %v233 = vstv %s232
        %vm234 = vcmp.eq.s32.totalorder %v160, %v233
        %v235 = vsel %vm234, 1, 0
        %v236 = vcvt.s32.f32 %v235
        %v237 = vadd.f32 %v230, %v236
        %s238 = sadd.s32 %s158, 11
        %s239 = sld [smem:[#allocation3 + %s238]]
        %v240 = vstv %s239
        %vm241 = vcmp.eq.s32.totalorder %v160, %v240
        %v242 = vsel %vm241, 1, 0
        %v243 = vcvt.s32.f32 %v242
        %v244 = vadd.f32 %v237, %v243
        %s245 = sadd.s32 %s158, 12
        %s246 = sld [smem:[#allocation3 + %s245]]
        %v247 = vstv %s246
        %vm248 = vcmp.eq.s32.totalorder %v160, %v247
        %v249 = vsel %vm248, 1, 0
        %v250 = vcvt.s32.f32 %v249
        %v251 = vadd.f32 %v244, %v250
        %s252 = sadd.s32 %s158, 13
        %s253 = sld [smem:[#allocation3 + %s252]]
        %v254 = vstv %s253
        %vm255 = vcmp.eq.s32.totalorder %v160, %v254
        %v256 = vsel %vm255, 1, 0
        %v257 = vcvt.s32.f32 %v256
        %v258 = vadd.f32 %v251, %v257
        %s259 = sadd.s32 %s158, 14
        %s260 = sld [smem:[#allocation3 + %s259]]
        %v261 = vstv %s260
        %vm262 = vcmp.eq.s32.totalorder %v160, %v261
        %v263 = vsel %vm262, 1, 0
        %v264 = vcvt.s32.f32 %v263
        %v265 = vadd.f32 %v258, %v264
        %s266 = sadd.s32 %s158, 15
        %s267 = sld [smem:[#allocation3 + %s266]]
        %v268 = vstv %s267
        %vm269 = vcmp.eq.s32.totalorder %v160, %v268
        %v270 = vsel %vm269, 1, 0
        %v271 = vcvt.s32.f32 %v270
        %v272 = vadd.f32 %v265, %v271
        %v273 = vmul.f32 %v272, 0.125
        %vm274 = vcmask 1040384
        %v275 = vsel %vm274, %v216, %v273
        %v276 = vld [vmem:[#allocation4] sm:$0xf]
        %v277 = vld [vmem:[#allocation4 + $0x4] sm:$0xf]
        %v278 = vld [vmem:[#allocation4 + $0x8] sm:$0xf]
        %v279 = vld [vmem:[#allocation4 + $0xc] sm:$0xf]
        %v280 = vld [vmem:[#allocation4 + $0x10] sm:$0xf]
        %v281 = vld [vmem:[#allocation4 + $0x14] sm:$0xf]
        %v282 = vld [vmem:[#allocation4 + $0x18] sm:$0xf]
        %v283 = vld [vmem:[#allocation4 + $0x1c] sm:$0xf]
        %v284 = vpack.c.bf16 %v275, %v275
        %v293 = vunpack.c.l.b16 %v276
        %v294 = vunpack.c.l.b16 %v277
        %v295 = vunpack.c.l.b16 %v278
        %v296 = vunpack.c.l.b16 %v279
        %v297 = vunpack.c.l.b16 %v280
        %v298 = vunpack.c.l.b16 %v281
        %v299 = vunpack.c.l.b16 %v282
        %v300 = vunpack.c.l.b16 %v283
        %v301 = vpack.c.b16 %v294, %v293
        %v302 = vpack.c.b16 %v296, %v295
        %v303 = vpack.c.b16 %v298, %v297
        %v304 = vpack.c.b16 %v300, %v299
        %vm309 = vcmask 523264
        %v311 = vsel %vm309, %v284, 0
        %313 = vmatprep.subr.bf16.mxu0 0
        %314 = vmatpush1.bf16.msra.mxu0 %v301
        %315 = vmatprep.subr.bf16.mxu0 0
        %316 = vmatpush1.bf16.msra.mxu0 %v302
        %317 = vmatprep.subr.bf16.mxu0 0
        %318 = vmatpush1.bf16.msra.mxu0 %v303
        %319 = vmatprep.subr.bf16.mxu0 0
        %320 = vmatpush1.bf16.msra.mxu0 %v304
        %321 = vmatprep.subr.bf16.mxu0 0
        %322 = vmatpush1.bf16.msra.mxu0 0
        %323 = vmatprep.subr.bf16.mxu0 0
        %324 = vmatpush1.bf16.msra.mxu0 0
        %325 = vmatprep.subr.bf16.mxu0 0
        %326 = vmatpush1.bf16.msra.mxu0 0
        %327 = vmatprep.subr.bf16.mxu0 0
        %328 = vmatpush1.bf16.msra.mxu0 0
        %329 = vmatprep.subr.bf16.mxu0 0
        %330 = vmatpush1.bf16.msra.mxu0 0
        %331 = vmatprep.subr.bf16.mxu0 0
        %332 = vmatpush1.bf16.msra.mxu0 0
        %333 = vmatprep.subr.bf16.mxu0 0
        %334 = vmatpush1.bf16.msra.mxu0 0
        %335 = vmatprep.subr.bf16.mxu0 0
        %336 = vmatpush1.bf16.msra.mxu0 0
        %337 = vmatprep.subr.bf16.mxu0 0
        %338 = vmatpush1.bf16.msra.mxu0 0
        %339 = vmatprep.subr.bf16.mxu0 0
        %340 = vmatpush1.bf16.msra.mxu0 0
        %341 = vmatprep.subr.bf16.mxu0 0
        %342 = vmatpush1.bf16.msra.mxu0 0
        %343 = vmatprep.subr.bf16.mxu0 0
        %344 = vmatpush1.bf16.msra.mxu0 0
        %345 = vmatprep.mubr.bf16.mxu0 0
        %346 = vmatmul.mubr.bf16.gmra.mrb[0].mxu0 %v311
        %v347 = vpop.f32.mrb[0].mxu0
        %v348 = vadd.f32 0.0, %v347
        %v349 = vpop.f32.mrb[0].mxu0
        %v350 = vpop.f32.mrb[0].mxu0
        %v351 = vpop.f32.mrb[0].mxu0
        %352 = vdwg.mxu0
        %v353 = vld [vmem:[#allocation4 + $0x20] sm:$0xf]
        %v354 = vld [vmem:[#allocation4 + $0x24] sm:$0xf]
        %v355 = vld [vmem:[#allocation4 + $0x28] sm:$0xf]
        %v356 = vld [vmem:[#allocation4 + $0x2c] sm:$0xf]
        %v357 = vld [vmem:[#allocation4 + $0x30] sm:$0xf]
        %v358 = vld [vmem:[#allocation4 + $0x34] sm:$0xf]
        %v359 = vld [vmem:[#allocation4 + $0x38] sm:$0xf]
        %v360 = vld [vmem:[#allocation4 + $0x3c] sm:$0xf]
        %v361 = vld [vmem:[#allocation4 + $0x40] sm:$0xf]
        %v362 = vld [vmem:[#allocation4 + $0x44] sm:$0xf]
        %v363 = vld [vmem:[#allocation4 + $0x48] sm:$0xf]
        %v364 = vld [vmem:[#allocation4 + $0x4c] sm:$0xf]
        %v365 = vld [vmem:[#allocation7] sm:$0x3]
        %v366 = vld [vmem:[#allocation7 + $0x8] sm:$0x3]
        %v367 = vpack.c.bf16 %v348, %v348
        %v372 = vunpack.c.l.b16 %v353
        %v373 = vunpack.c.l.b16 %v354
        %v374 = vunpack.c.l.b16 %v355
        %v375 = vunpack.c.l.b16 %v356
        %v376 = vpack.c.b16 %v373, %v372
        %v377 = vpack.c.b16 %v375, %v374
        %vm380 = vcmask 261120
        %v382 = vsel %vm380, %v367, 0
        %384 = vmatprep.subr.bf16.mxu0 0
        %385 = vmatpush1.bf16.msra.mxu0 %v376
        %386 = vmatprep.subr.bf16.mxu0 0
        %387 = vmatpush1.bf16.msra.mxu0 %v377
        %388 = vmatprep.subr.bf16.mxu0 0
        %389 = vmatpush1.bf16.msra.mxu0 0
        %390 = vmatprep.subr.bf16.mxu0 0
        %391 = vmatpush1.bf16.msra.mxu0 0
        %392 = vmatprep.subr.bf16.mxu0 0
        %393 = vmatpush1.bf16.msra.mxu0 0
        %394 = vmatprep.subr.bf16.mxu0 0
        %395 = vmatpush1.bf16.msra.mxu0 0
        %396 = vmatprep.subr.bf16.mxu0 0
        %397 = vmatpush1.bf16.msra.mxu0 0
        %398 = vmatprep.subr.bf16.mxu0 0
        %399 = vmatpush1.bf16.msra.mxu0 0
        %400 = vmatprep.subr.bf16.mxu0 0
        %401 = vmatpush1.bf16.msra.mxu0 0
        %402 = vmatprep.subr.bf16.mxu0 0
        %403 = vmatpush1.bf16.msra.mxu0 0
        %404 = vmatprep.subr.bf16.mxu0 0
        %405 = vmatpush1.bf16.msra.mxu0 0
        %406 = vmatprep.subr.bf16.mxu0 0
        %407 = vmatpush1.bf16.msra.mxu0 0
        %408 = vmatprep.subr.bf16.mxu0 0
        %409 = vmatpush1.bf16.msra.mxu0 0
        %410 = vmatprep.subr.bf16.mxu0 0
        %411 = vmatpush1.bf16.msra.mxu0 0
        %412 = vmatprep.subr.bf16.mxu0 0
        %413 = vmatpush1.bf16.msra.mxu0 0
        %414 = vmatprep.subr.bf16.mxu0 0
        %415 = vmatpush1.bf16.msra.mxu0 0
        %416 = vmatprep.mubr.bf16.mxu0 0
        %417 = vmatmul.mubr.bf16.gmra.mrb[0].mxu0 %v382
        %v418 = vpop.f32.mrb[0].mxu0
        %v419 = vadd.f32 %v365, %v418
        %v420 = vpop.f32.mrb[0].mxu0
        %v421 = vpop.f32.mrb[0].mxu0
        %v422 = vpop.f32.mrb[0].mxu0
        %423 = vdwg.mxu0
        %v424 = vmax.f32 %v419, 0.0
        %v425 = vpack.c.bf16 %v424, %v424
        %v434 = vunpack.c.l.b16 %v357
        %v435 = vunpack.c.l.b16 %v358
        %v436 = vunpack.c.l.b16 %v359
        %v437 = vunpack.c.l.b16 %v360
        %v438 = vunpack.c.l.b16 %v361
        %v439 = vunpack.c.l.b16 %v362
        %v440 = vunpack.c.l.b16 %v363
        %v441 = vunpack.c.l.b16 %v364
        %v442 = vpack.c.b16 %v435, %v434
        %v443 = vpack.c.b16 %v437, %v436
        %v444 = vpack.c.b16 %v439, %v438
        %v445 = vpack.c.b16 %v441, %v440
        %v451 = vsel %vm309, %v425, 0
        %453 = vmatprep.subr.bf16.mxu0 0
        %454 = vmatpush1.bf16.msra.mxu0 %v442
        %455 = vmatprep.subr.bf16.mxu0 0
        %456 = vmatpush1.bf16.msra.mxu0 %v443
        %457 = vmatprep.subr.bf16.mxu0 0
        %458 = vmatpush1.bf16.msra.mxu0 %v444
        %459 = vmatprep.subr.bf16.mxu0 0
        %460 = vmatpush1.bf16.msra.mxu0 %v445
        %461 = vmatprep.subr.bf16.mxu0 0
        %462 = vmatpush1.bf16.msra.mxu0 0
        %463 = vmatprep.subr.bf16.mxu0 0
        %464 = vmatpush1.bf16.msra.mxu0 0
        %465 = vmatprep.subr.bf16.mxu0 0
        %466 = vmatpush1.bf16.msra.mxu0 0
        %467 = vmatprep.subr.bf16.mxu0 0
        %468 = vmatpush1.bf16.msra.mxu0 0
        %469 = vmatprep.subr.bf16.mxu0 0
        %470 = vmatpush1.bf16.msra.mxu0 0
        %471 = vmatprep.subr.bf16.mxu0 0
        %472 = vmatpush1.bf16.msra.mxu0 0
        %473 = vmatprep.subr.bf16.mxu0 0
        %474 = vmatpush1.bf16.msra.mxu0 0
        %475 = vmatprep.subr.bf16.mxu0 0
        %476 = vmatpush1.bf16.msra.mxu0 0
        %477 = vmatprep.subr.bf16.mxu0 0
        %478 = vmatpush1.bf16.msra.mxu0 0
        %479 = vmatprep.subr.bf16.mxu0 0
        %480 = vmatpush1.bf16.msra.mxu0 0
        %481 = vmatprep.subr.bf16.mxu0 0
        %482 = vmatpush1.bf16.msra.mxu0 0
        %483 = vmatprep.subr.bf16.mxu0 0
        %484 = vmatpush1.bf16.msra.mxu0 0
        %485 = vmatprep.mubr.bf16.mxu0 0
        %486 = vmatmul.mubr.bf16.gmra.mrb[0].mxu0 %v451
        %v487 = vpop.f32.mrb[0].mxu0
        %v488 = vadd.f32 %v366, %v487
        %v489 = vpop.f32.mrb[0].mxu0
        %v490 = vpop.f32.mrb[0].mxu0
        %v491 = vpop.f32.mrb[0].mxu0
        %492 = vdwg.mxu0
        %v493 = vxor.u32 %v488, 2147483648
        %v494 = vmul.f32 %v493, 1.442695
        %v495 = vpow.pop %v494
        %v496 = vadd.f32 %v495, 1.0
        %v497 = vrcp.pop %v496
        %v498 = vmul.f32 1.0, %v497
        %v499 = vld [vmem:[#allocation4 + $0x50] sm:$0xf]
        %v500 = vld [vmem:[#allocation4 + $0x54] sm:$0xf]
        %v501 = vld [vmem:[#allocation4 + $0x58] sm:$0xf]
        %v502 = vld [vmem:[#allocation4 + $0x5c] sm:$0xf]
        %v503 = vld [vmem:[#allocation4 + $0x60] sm:$0xf]
        %v504 = vld [vmem:[#allocation4 + $0x64] sm:$0xf]
        %v505 = vld [vmem:[#allocation4 + $0x68] sm:$0xf]
        %v506 = vld [vmem:[#allocation4 + $0x6c] sm:$0xf]
        %v507 = vld [vmem:[#allocation4 + $0x70] sm:$0xf]
        %v508 = vld [vmem:[#allocation4 + $0x74] sm:$0xf]
        %v509 = vld [vmem:[#allocation4 + $0x78] sm:$0xf]
        %v510 = vld [vmem:[#allocation4 + $0x7c] sm:$0xf]
        %v511 = vld [vmem:[#allocation4 + $0x80] sm:$0xf]
        %v512 = vld [vmem:[#allocation4 + $0x84] sm:$0xf]
        %v513 = vld [vmem:[#allocation4 + $0x88] sm:$0xf]
        %v514 = vld [vmem:[#allocation4 + $0x8c] sm:$0xf]
        %v515 = vld [vmem:[#allocation4 + $0x90] sm:$0xf]
        %v516 = vld [vmem:[#allocation4 + $0x94] sm:$0xf]
        %v517 = vld [vmem:[#allocation4 + $0x98] sm:$0xf]
        %v518 = vld [vmem:[#allocation4 + $0x9c] sm:$0xf]
        %v519 = vld [vmem:[#allocation7 + $0x10] sm:$0x1]
        %v520 = vld [vmem:[#allocation7 + $0x18] sm:$0x1]
        %v521 = vpack.c.bf16 %v498, %v498
        %v522 = vlaneseq
        %v523 = vshrl.u32 %v522, 7
        %v524 = vsub.s32 0, %v523
        %v525 = vrot.slane %v519, %v524
        %v542 = vunpack.c.l.b16 %v499
        %v543 = vunpack.c.l.b16 %v500
        %v544 = vunpack.c.l.b16 %v501
        %v545 = vunpack.c.l.b16 %v502
        %v546 = vunpack.c.l.b16 %v503
        %v547 = vunpack.c.l.b16 %v504
        %v548 = vunpack.c.l.b16 %v505
        %v549 = vunpack.c.l.b16 %v506
        %v550 = vunpack.c.l.b16 %v507
        %v551 = vunpack.c.l.b16 %v508
        %v552 = vunpack.c.l.b16 %v509
        %v553 = vunpack.c.l.b16 %v510
        %v554 = vunpack.c.l.b16 %v511
        %v555 = vunpack.c.l.b16 %v512
        %v556 = vunpack.c.l.b16 %v513
        %v557 = vunpack.c.l.b16 %v514
        %v558 = vpack.c.b16 %v543, %v542
        %v559 = vpack.c.b16 %v545, %v544
        %v560 = vpack.c.b16 %v547, %v546
        %v561 = vpack.c.b16 %v549, %v548
        %v562 = vpack.c.b16 %v551, %v550
        %v563 = vpack.c.b16 %v553, %v552
        %v564 = vpack.c.b16 %v555, %v554
        %v565 = vpack.c.b16 %v557, %v556
        %574 = vmatprep.subr.bf16.mxu0 0
        %575 = vmatpush1.bf16.msra.mxu0 %v558
        %576 = vmatprep.subr.bf16.mxu0 0
        %577 = vmatpush1.bf16.msra.mxu0 %v559
        %578 = vmatprep.subr.bf16.mxu0 0
        %579 = vmatpush1.bf16.msra.mxu0 %v560
        %580 = vmatprep.subr.bf16.mxu0 0
        %581 = vmatpush1.bf16.msra.mxu0 %v561
        %582 = vmatprep.subr.bf16.mxu0 0
        %583 = vmatpush1.bf16.msra.mxu0 %v562
        %584 = vmatprep.subr.bf16.mxu0 0
        %585 = vmatpush1.bf16.msra.mxu0 %v563
        %586 = vmatprep.subr.bf16.mxu0 0
        %587 = vmatpush1.bf16.msra.mxu0 %v564
        %588 = vmatprep.subr.bf16.mxu0 0
        %589 = vmatpush1.bf16.msra.mxu0 %v565
        %590 = vmatprep.subr.bf16.mxu0 0
        %591 = vmatpush1.bf16.msra.mxu0 0
        %592 = vmatprep.subr.bf16.mxu0 0
        %593 = vmatpush1.bf16.msra.mxu0 0
        %594 = vmatprep.subr.bf16.mxu0 0
        %595 = vmatpush1.bf16.msra.mxu0 0
        %596 = vmatprep.subr.bf16.mxu0 0
        %597 = vmatpush1.bf16.msra.mxu0 0
        %598 = vmatprep.subr.bf16.mxu0 0
        %599 = vmatpush1.bf16.msra.mxu0 0
        %600 = vmatprep.subr.bf16.mxu0 0
        %601 = vmatpush1.bf16.msra.mxu0 0
        %602 = vmatprep.subr.bf16.mxu0 0
        %603 = vmatpush1.bf16.msra.mxu0 0
        %604 = vmatprep.subr.bf16.mxu0 0
        %605 = vmatpush1.bf16.msra.mxu0 0
        %606 = vmatprep.mubr.bf16.mxu0 0
        %607 = vmatmul.mubr.bf16.gmra.mrb[0].mxu0 %v521
        %v608 = vpop.f32.mrb[0].mxu0
        %v609 = vadd.f32 %v525, %v608
        %v610 = vpop.f32.mrb[0].mxu0
        %v611 = vpop.f32.mrb[0].mxu0
        %v612 = vpop.f32.mrb[0].mxu0
        %613 = vdwg.mxu0
        %v614 = vmax.f32 %v609, 0.0
        %v615 = vpack.c.bf16 %v614, %v614
        %v616 = vlaneseq
        %v617 = vshrl.u32 %v616, 7
        %v618 = vsub.s32 0, %v617
        %v619 = vrot.slane %v520, %v618
        %v624 = vunpack.c.l.b16 %v515
        %v625 = vunpack.c.l.b16 %v516
        %v626 = vunpack.c.l.b16 %v517
        %v627 = vunpack.c.l.b16 %v518
        %v628 = vpack.c.b16 %v625, %v624
        %v629 = vpack.c.b16 %v627, %v626
        %v633 = vsel %vm380, %v615, 0
        %635 = vmatprep.subr.bf16.mxu0 0
        %636 = vmatpush1.bf16.msra.mxu0 %v628
        %637 = vmatprep.subr.bf16.mxu0 0
        %638 = vmatpush1.bf16.msra.mxu0 %v629
        %639 = vmatprep.subr.bf16.mxu0 0
        %640 = vmatpush1.bf16.msra.mxu0 0
        %641 = vmatprep.subr.bf16.mxu0 0
        %642 = vmatpush1.bf16.msra.mxu0 0
        %643 = vmatprep.subr.bf16.mxu0 0
        %644 = vmatpush1.bf16.msra.mxu0 0
        %645 = vmatprep.subr.bf16.mxu0 0
        %646 = vmatpush1.bf16.msra.mxu0 0
        %647 = vmatprep.subr.bf16.mxu0 0
        %648 = vmatpush1.bf16.msra.mxu0 0
        %649 = vmatprep.subr.bf16.mxu0 0
        %650 = vmatpush1.bf16.msra.mxu0 0
        %651 = vmatprep.subr.bf16.mxu0 0
        %652 = vmatpush1.bf16.msra.mxu0 0
        %653 = vmatprep.subr.bf16.mxu0 0
        %654 = vmatpush1.bf16.msra.mxu0 0
        %655 = vmatprep.subr.bf16.mxu0 0
        %656 = vmatpush1.bf16.msra.mxu0 0
        %657 = vmatprep.subr.bf16.mxu0 0
        %658 = vmatpush1.bf16.msra.mxu0 0
        %659 = vmatprep.subr.bf16.mxu0 0
        %660 = vmatpush1.bf16.msra.mxu0 0
        %661 = vmatprep.subr.bf16.mxu0 0
        %662 = vmatpush1.bf16.msra.mxu0 0
        %663 = vmatprep.subr.bf16.mxu0 0
        %664 = vmatpush1.bf16.msra.mxu0 0
        %665 = vmatprep.subr.bf16.mxu0 0
        %666 = vmatpush1.bf16.msra.mxu0 0
        %667 = vmatprep.mubr.bf16.mxu0 0
        %668 = vmatmul.mubr.bf16.gmra.mrb[0].mxu0 %v633
        %v669 = vpop.f32.mrb[0].mxu0
        %v670 = vadd.f32 %v619, %v669
        %v671 = vpop.f32.mrb[0].mxu0
        %v672 = vpop.f32.mrb[0].mxu0
        %v673 = vpop.f32.mrb[0].mxu0
        %674 = vdwg.mxu0
        %v675 = vxor.u32 %v670, 2147483648
        %v676 = vmul.f32 %v675, 1.442695
        %v677 = vpow.pop %v676
        %v678 = vadd.f32 %v677, 1.0
        %v679 = vrcp.pop %v678
        %v680 = vmul.f32 1.0, %v679
        %v681 = vld [vmem:[#allocation7 + $0x28] sm:$0x3]
        %v682 = vld [vmem:[#allocation7 + $0x2a] sm:$0x3]
        %v683 = vld [vmem:[#allocation7 + $0x20] sm:$0x1]
        %v684 = vmul.f32 %v680, %v681
        %vm685 = vcmask 1041408
        %v686 = vsel %vm685, %v684, 0.0
        %687 = vadd.xlane.f32.xlu0 %v686
        %v688 = vpop.xlane.xlu0 %687
        %v689 = vsel %vm685, %v688, 0.0
        %v690 = vrot.slane %v689, 4
        %v691 = vadd.f32 %v689, %v690
        %v692 = vrot.slane %v691, 2
        %v693 = vadd.f32 %v691, %v692
        %v694 = vrot.slane %v693, 1
        %v695 = vadd.f32 %v693, %v694
        %v696 = vadd.f32 %v695, %v683
        %v697 = vmul.f32 %v680, %v682
        %v698 = vsel %vm685, %v697, 0.0
        %699 = vadd.xlane.f32.xlu0 %v698
        %v700 = vpop.xlane.xlu0 %699
        %v701 = vsel %vm685, %v700, 0.0
        %v702 = vrot.slane %v701, 4
        %v703 = vadd.f32 %v701, %v702
        %v704 = vrot.slane %v703, 2
        %v705 = vadd.f32 %v703, %v704
        %v706 = vrot.slane %v705, 1
        %v707 = vadd.f32 %v705, %v706
        %v708 = vadd.f32 %v707, %v683
        %vm709 = vcmp.eq.s32.totalorder %v160, 0
        %vm710 = vcmp.eq.s32.totalorder %v160, 1
        %712 = vset.pattern.permute.xlu0 1
        %713 = vperm.xlu0 %712, %v708
        %v714 = vpop.permute.xlu0 %713
        %v716 = vsel %vm710, %v714, -1e+30
        %718 = vset.pattern.permute.xlu0 0
        %719 = vperm.xlu0 %718, %v696
        %v720 = vpop.permute.xlu0 %719
        %v722 = vsel %vm709, %v720, %v716
        %v723 = vsel %vm274, %v722, -inf
        %724 = vmax.xlane.f32.xlu0 %v723
        %v725 = vpop.xlane.xlu0 %724
        %v726 = vsub.f32 %v722, %v725
        %v727 = vmul.f32 %v726, 1.442695
        %v728 = vpow.pop %v727
        %v729 = vsel %vm274, %v728, 0.0
        %730 = vadd.xlane.f32.xlu0 %v729
        %v731 = vpop.xlane.xlu0 %730
        %v732 = vrcp.pop %v731
        %v733 = vmul.f32 %v728, %v732
        %v735 = vrot.slane %v733, 6
        %v737 = vsel %vm685, %v498, %v735
        %vm738 = vcmask 1042432
        %v739 = vsel %vm738, %v737, 0.0
        %740 = vst [vmem:[%s156] sm:$0xff] %v739
        %s741 = sand.u32 %s73, 1
        %s742 = scalar_lea.sflag [#allocation6], %s741
        %s743 = sand.u32 %s73, 1
        %s744 = smul.addr %s743, 8
        %s745 = scalar_lea.vmem [#allocation9], %s744
        // Predicated region
        $region37: #{tpu_custom_call.1} parent=27 // pred_check
          %p746 = pneg %p83
        $region38: #{tpu_custom_call.1} parent=27 // pred_check_branch
          %748 = sbr.rel (%p746) target = $region40
        $region39: #{tpu_custom_call.1} parent=27 // pred_region
          %s750 = ssub.s32 128, 128
          %751 = vsyncadd %s742, %s750
          %s752 = smul.addr %s23, 128
          %s753 = scalar_lea.hbm %s3, %s752
          %s755 = sshll.u32 %s745, 4
          %s756 = int_to_ptr.vmem [resolvable:$true] %s755
          %758 = dma.vmem_to_hbm [thread:$0]  %s756, 128, %s753, %s742
        $region40: #{tpu_custom_call.1} parent=27 // pred_fallthru
          _
      $region28: #{tpu_custom_call.1} parent=5 // pred_fallthru
        _
      %p759 = scmp.le.s32.totalorder 2, %s18
      // Predicated region
      $region41: #{tpu_custom_call.1} parent=5 // pred_check
        %p760 = pneg %p759
      $region42: #{tpu_custom_call.1} parent=5 // pred_check_branch
        %762 = sbr.rel (%p760) target = $region44
      $region43: #{tpu_custom_call.1} parent=5 // pred_region
        %s763 = ssub.s32 %s18, 2
        // Predicated region
        $region45: #{tpu_custom_call.1} parent=43 // pred_check
          %p764 = pneg %p89
        $region46: #{tpu_custom_call.1} parent=43 // pred_check_branch
          %766 = sbr.rel (%p764) target = $region48
        $region47: #{tpu_custom_call.1} parent=43 // pred_region
          %s767 = sand.u32 %s74, 1
          %s768 = scalar_lea.sflag [#allocation6], %s767
          %s769 = sand.u32 %s74, 1
          %s770 = smul.addr %s769, 8
          %s771 = scalar_lea.vmem [#allocation9], %s770
          %772 = dma.done %s768, 128
        $region48: #{tpu_custom_call.1} parent=43 // pred_fallthru
          _
      $region44: #{tpu_custom_call.1} parent=5 // pred_fallthru
        _
    $region6: #{tpu_custom_call.1} parent=1 // loop_footer
      %s22 = sadd.s32 1, %s18
    $region7: #{tpu_custom_call.1} parent=1 // loop_footer_branch
      %17 = sbr.rel target = $region3
    $region8: #{tpu_custom_call.1} parent=1 // loop_exit
      _
    %773 = vsyncpa [#allocation5], 1
    %s774 = scalar_lea.sflag [#allocation5], 1
    %775 = vsyncpa %s774, 1
    %776 = vsyncpa [#allocation8], 1
    %777 = vsyncpa [#allocation6], 1
    %s778 = scalar_lea.sflag [#allocation6], 1
    %779 = vsyncpa %s778, 1

</llo_original>
